<compile_context>
chip_gen: v6e
topology: v6e:2x2x1
jax: 0.10.0
libtpu: 0.0.40
codegen_flags: <defaults>
</compile_context>

<pallas_src>
import jax
import jax.numpy as jnp
from jax.experimental import pallas as pl
from jax.experimental.pallas import tpu as pltpu

LANES = 128


def nnet_kernel(xt_ref, w1t_ref, b1_ref, w2_ref, b2_ref, o_ref):
    xt = xt_ref[...]                     # (in, TB)   batch on lanes
    w1t = w1t_ref[...]                   # (hidden, in)  == PyTorch layer1.weight
    in_size = w1t.shape[1]

    # ---- Layer 1 on the VPU: K == in_size (2) statically unrolled
    # broadcast-FMAs.  (hidden,1) lane-broadcast * (1,TB) sublane-broadcast
    # -> fully dense (hidden, TB) vregs.
    h = w1t[:, 0:1] * xt[0:1, :]
    for k in range(1, in_size):
        h = h + w1t[:, k:k + 1] * xt[k:k + 1, :]
    h = jnp.tanh(h + b1_ref[...])        # (hidden, TB); tanh on the EUP

    # ---- Layer 2 on VPU + XLU (no MXU): per real output column, a
    # lane-dense multiply with a sublane reduction over hidden.
    w2 = w2_ref[...]                     # (hidden, out)
    out_size = w2.shape[1]
    rows = []
    for o in range(out_size):            # static unroll; out_size == 1 here
        rows.append(jnp.sum(w2[:, o:o + 1] * h, axis=0, keepdims=True))
    y = rows[0] if out_size == 1 else jnp.concatenate(rows, axis=0)
    y = jnp.tanh(y + b2_ref[...])        # (out, TB), lane-dense
    o_ref[...] = y.astype(o_ref.dtype)   # narrow store: out_size*4 B/row


def _nnet_call(xt, w1t, b1c, w2m, b2c, *, batch_tile=None):
    """Run the kernel on xt (in, B); returns (out, B)."""
    in_size, B = xt.shape
    hidden = w1t.shape[0]
    out_size = w2m.shape[1]

    cost = pl.CostEstimate(
        flops=2 * B * hidden * (in_size + out_size),
        transcendentals=B * (hidden + out_size),
        bytes_accessed=4 * B * (in_size + out_size),
    )

    if batch_tile is None:
        # Gridless: every operand is one full-array VMEM block — no software
        # pipeline, no double buffering of ~KB operands.
        vmem = pl.BlockSpec(memory_space=pltpu.MemorySpace.VMEM)
        return pl.pallas_call(
            nnet_kernel,
            out_shape=jax.ShapeDtypeStruct((out_size, B), jnp.float32),
            in_specs=[vmem] * 5,
            out_specs=vmem,
            cost_estimate=cost,
        )(xt, w1t, b1c, w2m, b2c)

    # Batch-tiled grid; weights/biases stay VMEM-resident via constant
    # index_maps.  cdiv grid: the ragged last tile's OOB lanes are read as
    # garbage (never reduced over) and its OOB stores are masked — no
    # jnp.pad copy of x.
    nb = pl.cdiv(B, batch_tile)
    return pl.pallas_call(
        nnet_kernel,
        out_shape=jax.ShapeDtypeStruct((out_size, B), jnp.float32),
        grid=(nb,),
        in_specs=[
            pl.BlockSpec((in_size, batch_tile), lambda i: (0, i)),
            pl.BlockSpec((hidden, in_size), lambda i: (0, 0)),
            pl.BlockSpec((hidden, 1), lambda i: (0, 0)),
            pl.BlockSpec((hidden, out_size), lambda i: (0, 0)),
            pl.BlockSpec((out_size, 1), lambda i: (0, 0)),
        ],
        out_specs=pl.BlockSpec((out_size, batch_tile), lambda i: (0, i)),
        compiler_params=pltpu.CompilerParams(
            dimension_semantics=("parallel",)),
        cost_estimate=cost,
    )(xt, w1t, b1c, w2m, b2c)


def prepare_params(w1, b1, w2, b2):
    """One-time (per model) reshape/transpose of params into kernel layout.

    w1t is exactly PyTorch layer1.weight ([out,in]); w2m is layer2.weight.T.
    """
    hidden = w1.shape[1]
    out_size = w2.shape[1]
    w1t = jnp.asarray(w1, jnp.float32).T                 # (hidden, in)
    b1c = jnp.asarray(b1, jnp.float32).reshape(hidden, 1)
    w2m = jnp.asarray(w2, jnp.float32)                   # (hidden, out)
    b2c = jnp.asarray(b2, jnp.float32).reshape(out_size, 1)
    return w1t, b1c, w2m, b2c


def nnet_forward(x, w1t, b1c, w2m, b2c, *, batch_tile=2048):
    """x: (B, in_size) -> (B, out_size).  Jit this (batch_tile static)."""
    B = x.shape[0]
    xt = jnp.asarray(x, jnp.float32).T   # (in, B): batch on lanes; one-time
                                         # 8 B/row transpose, fused under jit
    if B <= batch_tile:
        yt = _nnet_call(xt, w1t, b1c, w2m, b2c)
    else:
        # B > batch_tile guarantees >= 2 grid tiles (v7x megacore sharding).
        yt = _nnet_call(xt, w1t, b1c, w2m, b2c, batch_tile=batch_tile)
    return yt.T                          # (B, out); out_size==1 => free reshape


nnet_forward_jit = jax.jit(nnet_forward, static_argnames=("batch_tile",))


def init_linear_params(key, in_features, out_features):
    """PyTorch nn.Linear default init: U(-1/sqrt(fan_in), 1/sqrt(fan_in))."""
    kw, kb = jax.random.split(key)
    bound = 1.0 / jnp.sqrt(jnp.float32(in_features))
    w = jax.random.uniform(kw, (in_features, out_features), jnp.float32, -bound, bound)
    b = jax.random.uniform(kb, (out_features,), jnp.float32, -bound, bound)
    return w, b


if __name__ == "__main__":
    # Module spec: 2 input features (CSV columns 0:2), small synthetic shapes.
    # TODO(synk): dataset_simple.csv loading is data input, not forward-pass
    # compute; synthetic inputs are used instead.
    in_size, hidden_size, out_size = 2, 32, 1

    key = jax.random.PRNGKey(0)
    kx, k1, k2, kxl = jax.random.split(key, 4)

    w1, b1 = init_linear_params(k1, in_size, hidden_size)
    w2, b2 = init_linear_params(k2, hidden_size, out_size)
    w1t, b1c, w2m, b2c = prepare_params(w1, b1, w2, b2)

    def ref_fn(xv):
        return jnp.tanh(jnp.tanh(xv @ w1 + b1.reshape(1, -1)) @ w2
                        + b2.reshape(1, -1))

    # --- small batch: gridless path ---
    x_small = jax.random.normal(kx, (8, in_size), jnp.float32)
    out_small = jax.block_until_ready(
        nnet_forward_jit(x_small, w1t, b1c, w2m, b2c))
    assert out_small.shape == (8, out_size)
    assert jnp.allclose(out_small, ref_fn(x_small), atol=1e-5), "small mismatch"

    # --- larger batch: "parallel" grid path with a ragged (masked) last tile ---
    x_large = jax.random.normal(kxl, (1000, in_size), jnp.float32)
    out_large = jax.block_until_ready(
        nnet_forward_jit(x_large, w1t, b1c, w2m, b2c, batch_tile=256))
    assert out_large.shape == (1000, out_size)
    assert jnp.allclose(out_large, ref_fn(x_large), atol=1e-5), "large mismatch"

    print("KERNEL_OK")
</pallas_src>

<mosaic_0001>
module attributes {stable_mosaic.version = 11 : i64} {
  func.func @nnet_kernel(%arg0: memref<2x8xf32, #tpu.memory_space<vmem>>, %arg1: memref<32x2xf32, #tpu.memory_space<vmem>>, %arg2: memref<32x1xf32, #tpu.memory_space<vmem>>, %arg3: memref<32x1xf32, #tpu.memory_space<vmem>>, %arg4: memref<1x1xf32, #tpu.memory_space<vmem>>, %arg5: memref<1x8xf32, #tpu.memory_space<vmem>>) attributes {dimension_semantics = [], scalar_prefetch = 0 : i64, scratch_operands = 0 : i64, tpu.core_type = #tpu.core_type<tc>} {
    %c0 = arith.constant 0 : index
    %c0_0 = arith.constant 0 : index
    %0 = vector.load %arg0[%c0, %c0_0] : memref<2x8xf32, #tpu.memory_space<vmem>>, vector<2x8xf32>
    %c0_1 = arith.constant 0 : index
    %c0_2 = arith.constant 0 : index
    %1 = vector.load %arg1[%c0_1, %c0_2] : memref<32x2xf32, #tpu.memory_space<vmem>>, vector<32x2xf32>
    %2 = vector.extract_strided_slice %1 {offsets = [0, 0], sizes = [32, 1], strides = [1, 1]} : vector<32x2xf32> to vector<32x1xf32>
    %3 = vector.extract_strided_slice %0 {offsets = [0, 0], sizes = [1, 8], strides = [1, 1]} : vector<2x8xf32> to vector<1x8xf32>
    %4 = vector.broadcast %2 : vector<32x1xf32> to vector<32x8xf32>
    %5 = vector.broadcast %3 : vector<1x8xf32> to vector<32x8xf32>
    %6 = arith.mulf %4, %5 : vector<32x8xf32>
    %7 = vector.extract_strided_slice %1 {offsets = [0, 1], sizes = [32, 1], strides = [1, 1]} : vector<32x2xf32> to vector<32x1xf32>
    %8 = vector.extract_strided_slice %0 {offsets = [1, 0], sizes = [1, 8], strides = [1, 1]} : vector<2x8xf32> to vector<1x8xf32>
    %9 = vector.broadcast %7 : vector<32x1xf32> to vector<32x8xf32>
    %10 = vector.broadcast %8 : vector<1x8xf32> to vector<32x8xf32>
    %11 = arith.mulf %9, %10 : vector<32x8xf32>
    %12 = arith.addf %6, %11 : vector<32x8xf32>
    %c0_3 = arith.constant 0 : index
    %c0_4 = arith.constant 0 : index
    %13 = vector.load %arg2[%c0_3, %c0_4] : memref<32x1xf32, #tpu.memory_space<vmem>>, vector<32x1xf32>
    %14 = vector.broadcast %13 : vector<32x1xf32> to vector<32x8xf32>
    %15 = arith.addf %12, %14 : vector<32x8xf32>
    %16 = math.tanh %15 : vector<32x8xf32>
    %c0_5 = arith.constant 0 : index
    %c0_6 = arith.constant 0 : index
    %17 = vector.load %arg3[%c0_5, %c0_6] : memref<32x1xf32, #tpu.memory_space<vmem>>, vector<32x1xf32>
    %18 = vector.broadcast %17 : vector<32x1xf32> to vector<32x8xf32>
    %19 = arith.mulf %18, %16 : vector<32x8xf32>
    %cst = arith.constant dense<0.000000e+00> : vector<8xf32>
    %20 = vector.multi_reduction <add>, %19, %cst [0] : vector<32x8xf32> to vector<8xf32>
    %21 = vector.shape_cast %20 : vector<8xf32> to vector<1x8xf32>
    %c0_7 = arith.constant 0 : index
    %c0_8 = arith.constant 0 : index
    %22 = vector.load %arg4[%c0_7, %c0_8] : memref<1x1xf32, #tpu.memory_space<vmem>>, vector<1x1xf32>
    %23 = vector.broadcast %22 : vector<1x1xf32> to vector<1x8xf32>
    %24 = arith.addf %21, %23 : vector<1x8xf32>
    %25 = math.tanh %24 : vector<1x8xf32>
    %c0_9 = arith.constant 0 : index
    %c0_10 = arith.constant 0 : index
    %26 = vector.load %arg5[%c0_9, %c0_10] : memref<1x8xf32, #tpu.memory_space<vmem>>, vector<1x8xf32>
    tpu.vector_store %arg5[%c0_9, %c0_10], %25 {strides = array<i32>} : memref<1x8xf32, #tpu.memory_space<vmem>>, vector<1x8xf32>,
    return
  }
}

</mosaic_0001>

<llo_original>
// kernel: nnet_forward.1
$region0: #{nnet_forward.1}
  #allocation0 [shape = 'u32[]', space=smem, size = 0x4, offset = 0x4, fixed_abs, tag = 'smem constant byte address 0x4 - core index']
  #allocation1 [shape = 'u32[144,128]{1,0:T(1,128)}', space=vmem, size = 0x12000, scoped, tag = 'internal scratch']
  #allocation2 [shape = 'f32[1,1]{1,0:T(1,128)S(1)}', space=vmem, size = 0x200, scoped, tag = 'scoped memory for nnet_forward.1']
  %s0 = inlined_call_operand.vmem [shape: f32[2,8], index: 0, kind: input, shape index: {}]
  %s1 = inlined_call_operand.vmem [shape: f32[32,2], index: 1, kind: input, shape index: {}]
  %s2 = inlined_call_operand.vmem [shape: f32[32,1], index: 2, kind: input, shape index: {}]
  %s3 = inlined_call_operand.vmem [shape: f32[32,1], index: 3, kind: input, shape index: {}]
  %s4 = inlined_call_operand.<no memory space> [shape: f32[1,1], index: 4, kind: input, shape index: {}]
  %s5 = inlined_call_operand.hbm [shape: f32[1,8], index: 5, kind: output, shape index: {}]
  %s6 = sld [smem:[#allocation0]]
  $region30: #{nnet_forward.1} parent=0
    _
  %s8 = ssub.s32 1, %s6
  %s9 = scalar_select 0, %s8, %s6
  %v10 = vstv %s4
  %11 = vst [vmem:[#allocation2] sm:$0x1] %v10
  $region1: #{nnet_forward.1} parent=0
    #allocation3 [shape = 'u8[512]{0}', space=vmem, size = 0x400, scoped, tag = 'output window, operand 0, single buffered']
    #allocation4 [shape = 's32[1]{0}', space=sflag, size = 0x4, scoped, tag = 'scoped memory for nnet_forward.1']
    %12 = vsyncpa [#allocation4], 0
    // Predicated region
    $region2: #{nnet_forward.1} parent=1 // pred_check
      _
    $region3: #{nnet_forward.1} parent=1 // pred_check_branch
      %14 = sbr.rel (0) target = $region5
    $region4: #{nnet_forward.1} parent=1 // pred_region
      _
    $region5: #{nnet_forward.1} parent=1 // pred_fallthru
      _
    // Predicated region
    $region6: #{nnet_forward.1} parent=1 // pred_check
      _
    $region7: #{nnet_forward.1} parent=1 // pred_check_branch
      %16 = sbr.rel (0) target = $region9
    $region8: #{nnet_forward.1} parent=1 // pred_region
      _
    $region9: #{nnet_forward.1} parent=1 // pred_fallthru
      _
    // Predicated region
    $region10: #{nnet_forward.1} parent=1 // pred_check
      _
    $region11: #{nnet_forward.1} parent=1 // pred_check_branch
      %18 = sbr.rel (0) target = $region13
    $region12: #{nnet_forward.1} parent=1 // pred_region
      _
    $region13: #{nnet_forward.1} parent=1 // pred_fallthru
      _
    // Predicated region
    $region14: #{nnet_forward.1} parent=1 // pred_check
      _
    $region15: #{nnet_forward.1} parent=1 // pred_check_branch
      %20 = sbr.rel (0) target = $region17
    $region16: #{nnet_forward.1} parent=1 // pred_region
      _
    $region17: #{nnet_forward.1} parent=1 // pred_fallthru
      _
    // Predicated region
    $region18: #{nnet_forward.1} parent=1 // pred_check
      _
    $region19: #{nnet_forward.1} parent=1 // pred_check_branch
      %22 = sbr.rel (0) target = $region21
    $region20: #{nnet_forward.1} parent=1 // pred_region
      _
    $region21: #{nnet_forward.1} parent=1 // pred_fallthru
      _
    %v23 = vld [vmem:[%s0] sm:$0x3]
    %v24 = vld [vmem:[%s1] sm:$0xff]
    %v25 = vld [vmem:[%s1 + $0x8] sm:$0xff]
    %v26 = vld [vmem:[%s1 + $0x10] sm:$0xff]
    %v27 = vld [vmem:[%s1 + $0x18] sm:$0xff]
    %29 = vset.pattern.permute.xlu0 0
    %30 = vperm.xlu0 %29, %v24
    %v31 = vpop.permute.xlu0 %30
    %34 = vset.pattern.permute.xlu0 0
    %35 = vperm.xlu0 %34, %v25
    %v36 = vpop.permute.xlu0 %35
    %39 = vset.pattern.permute.xlu0 0
    %40 = vperm.xlu0 %39, %v26
    %v41 = vpop.permute.xlu0 %40
    %44 = vset.pattern.permute.xlu0 0
    %45 = vperm.xlu0 %44, %v27
    %v46 = vpop.permute.xlu0 %45
    %v48 = vlaneseq
    %v49 = vshrl.u32 %v48, 7
    %v50 = vsub.s32 0, %v49
    %v51 = vrot.slane %v23, %v50
    %v52 = vmul.f32 %v31, %v51
    %v53 = vmul.f32 %v36, %v51
    %v54 = vmul.f32 %v41, %v51
    %v55 = vmul.f32 %v46, %v51
    %56 = vset.pattern.permute.xlu0 1
    %57 = vperm.xlu0 %56, %v24
    %v58 = vpop.permute.xlu0 %57
    %60 = vset.pattern.permute.xlu0 1
    %61 = vperm.xlu0 %60, %v25
    %v62 = vpop.permute.xlu0 %61
    %64 = vset.pattern.permute.xlu0 1
    %65 = vperm.xlu0 %64, %v26
    %v66 = vpop.permute.xlu0 %65
    %68 = vset.pattern.permute.xlu0 1
    %69 = vperm.xlu0 %68, %v27
    %v70 = vpop.permute.xlu0 %69
    %v72 = vlaneseq
    %v73 = vshrl.u32 %v72, 7
    %v74 = vsub.s32 1, %v73
    %v75 = vrot.slane %v23, %v74
    %v76 = vmul.f32 %v58, %v75
    %v77 = vmul.f32 %v62, %v75
    %v78 = vmul.f32 %v66, %v75
    %v79 = vmul.f32 %v70, %v75
    %v80 = vadd.f32 %v52, %v76
    %v81 = vadd.f32 %v53, %v77
    %v82 = vadd.f32 %v54, %v78
    %v83 = vadd.f32 %v55, %v79
    %v84 = vld [vmem:[%s2] sm:$0xff]
    %v85 = vld [vmem:[%s2 + $0x8] sm:$0xff]
    %v86 = vld [vmem:[%s2 + $0x10] sm:$0xff]
    %v87 = vld [vmem:[%s2 + $0x18] sm:$0xff]
    %89 = vset.pattern.permute.xlu0 0
    %90 = vperm.xlu0 %89, %v84
    %v91 = vpop.permute.xlu0 %90
    %94 = vset.pattern.permute.xlu0 0
    %95 = vperm.xlu0 %94, %v85
    %v96 = vpop.permute.xlu0 %95
    %99 = vset.pattern.permute.xlu0 0
    %100 = vperm.xlu0 %99, %v86
    %v101 = vpop.permute.xlu0 %100
    %104 = vset.pattern.permute.xlu0 0
    %105 = vperm.xlu0 %104, %v87
    %v106 = vpop.permute.xlu0 %105
    %v108 = vadd.f32 %v80, %v91
    %v109 = vadd.f32 %v81, %v96
    %v110 = vadd.f32 %v82, %v101
    %v111 = vadd.f32 %v83, %v106
    %v112 = vtanh.pop %v108
    %v113 = vtanh.pop %v109
    %v114 = vtanh.pop %v110
    %v115 = vtanh.pop %v111
    %v116 = vld [vmem:[%s3] sm:$0xff]
    %v117 = vld [vmem:[%s3 + $0x8] sm:$0xff]
    %v118 = vld [vmem:[%s3 + $0x10] sm:$0xff]
    %v119 = vld [vmem:[%s3 + $0x18] sm:$0xff]
    %121 = vset.pattern.permute.xlu0 0
    %122 = vperm.xlu0 %121, %v116
    %v123 = vpop.permute.xlu0 %122
    %126 = vset.pattern.permute.xlu0 0
    %127 = vperm.xlu0 %126, %v117
    %v128 = vpop.permute.xlu0 %127
    %131 = vset.pattern.permute.xlu0 0
    %132 = vperm.xlu0 %131, %v118
    %v133 = vpop.permute.xlu0 %132
    %136 = vset.pattern.permute.xlu0 0
    %137 = vperm.xlu0 %136, %v119
    %v138 = vpop.permute.xlu0 %137
    %v140 = vmul.f32 %v123, %v112
    %v141 = vmul.f32 %v128, %v113
    %v142 = vmul.f32 %v133, %v114
    %v143 = vmul.f32 %v138, %v115
    %vm144 = vcmask 64512
    %v145 = vsel %vm144, %v140, 0.0
    %v146 = vsel %vm144, %v141, 0.0
    %v147 = vadd.f32 %v145, %v146
    %v148 = vsel %vm144, %v142, 0.0
    %v149 = vadd.f32 %v147, %v148
    %v150 = vsel %vm144, %v143, 0.0
    %v151 = vadd.f32 %v149, %v150
    %v152 = vrot.slane %v151, 4
    %v153 = vadd.f32 %v151, %v152
    %v154 = vrot.slane %v153, 2
    %v155 = vadd.f32 %v153, %v154
    %v156 = vrot.slane %v155, 1
    %v157 = vadd.f32 %v155, %v156
    %v158 = vld [vmem:[#allocation2] sm:$0x1]
    %160 = vset.pattern.permute.xlu0 0
    %161 = vperm.xlu0 %160, %v158
    %v162 = vpop.permute.xlu0 %161
    %v164 = vlaneseq
    %v165 = vshrl.u32 %v164, 7
    %v166 = vsub.s32 0, %v165
    %v167 = vrot.slane %v162, %v166
    %v168 = vadd.f32 %v157, %v167
    %v169 = vtanh.pop %v168
    %vm170 = vcmask 57344
    %171 = vst.msk [vmem:[#allocation3] sm:$0x1] %vm170, %v169
    // Predicated region
    $region22: #{nnet_forward.1} parent=1 // pred_check
      _
    $region23: #{nnet_forward.1} parent=1 // pred_check_branch
      %173 = sbr.rel (0) target = $region25
    $region24: #{nnet_forward.1} parent=1 // pred_region
      %s175 = ssub.s32 16, 16
      %176 = vsyncadd [#allocation4], %s175
      %s178 = sshll.u32 [#allocation3], 4
      %s179 = int_to_ptr.vmem [resolvable:$true] %s178
      %181 = dma.vmem_to_hbm [thread:$0]  %s179, 16, %s5, [#allocation4]
    $region25: #{nnet_forward.1} parent=1 // pred_fallthru
      _
    // Predicated region
    $region26: #{nnet_forward.1} parent=1 // pred_check
      _
    $region27: #{nnet_forward.1} parent=1 // pred_check_branch
      %183 = sbr.rel (0) target = $region29
    $region28: #{nnet_forward.1} parent=1 // pred_region
      %184 = dma.done [#allocation4], 16
    $region29: #{nnet_forward.1} parent=1 // pred_fallthru
      _
    %185 = vsyncpa [#allocation4], 1

</llo_original>
